<compile_context>
chip_gen: v5e
topology: v5e:2x2
jax: 0.10.0
libtpu: 0.0.40
codegen_flags: <defaults>
</compile_context>

<pallas_src>
import functools

import jax
import jax.numpy as jnp
from jax import lax
from jax.experimental import pallas as pl
from jax.experimental.pallas import tpu as pltpu

_MAX_HW_TILE = 8192   # 128-aligned streaming tile; (D<=16, 8192) f32 x2 buffers < 1 MiB
_LANES = 128


def _reg_loss_kernel(feat_ref, ind_ref, tgt_ref, mask_ref, cw_ref,
                     loss_ref, msum_ref, acc_ref, *, hw, ragged):
    """Grid = (B, num_hw_tiles).  Each step streams one (D, T) feature tile.

    feat_ref : (1, D, T)   native dtype, channels-first flat view of the map
    ind_ref  : (1, 1, Mp)  int32 flat spatial indices (padding -> 0, masked out)
    tgt_ref  : (1, D, Mp)  target with the object axis on lanes
    mask_ref : (1, 1, Mp)  object mask (padding -> 0)
    cw_ref   : (1, D, 1)   code_weights * weight
    loss_ref : (1, D, 1)   per-batch, per-dim masked-L1 sum (already * cw)
    msum_ref : (1, 1, 1)   per-batch mask sum
    acc_ref  : (D, Mp) f32 gathered-pred accumulator across HW tiles
    """
    t = pl.program_id(1)

    @pl.when(t == 0)
    def _init():
        acc_ref[...] = jnp.zeros_like(acc_ref)

    tile = feat_ref.shape[2]
    mp = ind_ref.shape[2]
    off = t * tile

    feat = feat_ref[0]                                                   # (D, T)
    if ragged:
        # Last tile may read past HW: zero those columns so garbage can't leak
        # into the matmul accumulator (their one-hot is 0, but 0 * NaN != 0).
        lane = lax.broadcasted_iota(jnp.int32, feat.shape, 1) + off
        feat = jnp.where(lane < hw, feat, jnp.zeros_like(feat))

    # One-hot gather on the MXU: onehot[j, m] = (off + j == ind[m]).
    col = lax.broadcasted_iota(jnp.int32, (tile, mp), 0) + off           # (T, Mp)
    onehot = (col == ind_ref[0]).astype(feat.dtype)                      # (T, Mp)
    acc_ref[...] += jnp.dot(feat, onehot, preferred_element_type=jnp.float32)

    @pl.when(t == pl.num_programs(1) - 1)
    def _finalize():
        pred = acc_ref[...]                                              # (D, Mp) f32
        tgt = tgt_ref[0].astype(jnp.float32)                             # (D, Mp)
        msk = mask_ref[0].astype(jnp.float32)                            # (1, Mp)
        diff = jnp.abs(pred * msk - tgt * msk)                           # exact PyTorch form
        loss_ref[0] = jnp.sum(diff, axis=-1, keepdims=True) * cw_ref[0]  # (D, 1)
        msum_ref[0] = jnp.sum(msk, axis=-1, keepdims=True)               # (1, 1)


@jax.jit
def _reg_loss_pallas(output, mask, ind, target, cw_weighted):
    B, D, H, W = output.shape
    HW = H * W
    M = ind.shape[1]
    Mp = max(_LANES, ((M + _LANES - 1) // _LANES) * _LANES)

    # HW tile: full map if small (block == full dim is always legal), else a
    # 128-aligned streaming tile; ragged last tile is masked in-kernel.
    T = HW if HW <= _MAX_HW_TILE else _MAX_HW_TILE
    num_t = pl.cdiv(HW, T)
    ragged = (HW % T) != 0

    # Channels-first flat view of the map: a reshape, not a transpose/copy.
    feat = output.reshape(B, D, HW)

    # Tiny O(B*M*D) layout plumbing: object axis -> lanes, pad M to 128.
    pad_m = Mp - M
    ind_p = jnp.pad(ind.astype(jnp.int32), ((0, 0), (0, pad_m)))[:, None, :]   # (B, 1, Mp)
    mask_p = jnp.pad(mask, ((0, 0), (0, pad_m)))[:, None, :]                   # (B, 1, Mp)
    tgt_p = jnp.pad(jnp.swapaxes(target, 1, 2),
                    ((0, 0), (0, 0), (0, pad_m)))                              # (B, D, Mp)
    cw3 = cw_weighted.reshape(1, D, 1).astype(jnp.float32)

    kernel = functools.partial(_reg_loss_kernel, hw=HW, ragged=ragged)

    partials, msums = pl.pallas_call(
        kernel,
        out_shape=(jax.ShapeDtypeStruct((B, D, 1), jnp.float32),
                   jax.ShapeDtypeStruct((B, 1, 1), jnp.float32)),
        grid_spec=pltpu.PrefetchScalarGridSpec(
            num_scalar_prefetch=0,
            grid=(B, num_t),
            in_specs=[
                pl.BlockSpec((1, D, T), lambda b, t: (b, 0, t)),    # streamed feature tile
                pl.BlockSpec((1, 1, Mp), lambda b, t: (b, 0, 0)),   # ind   (resident per batch)
                pl.BlockSpec((1, D, Mp), lambda b, t: (b, 0, 0)),   # target
                pl.BlockSpec((1, 1, Mp), lambda b, t: (b, 0, 0)),   # mask
                pl.BlockSpec((1, D, 1), lambda b, t: (0, 0, 0)),    # code_weights * weight
            ],
            out_specs=[
                pl.BlockSpec((1, D, 1), lambda b, t: (b, 0, 0)),
                pl.BlockSpec((1, 1, 1), lambda b, t: (b, 0, 0)),
            ],
            scratch_shapes=[pltpu.VMEM((D, Mp), jnp.float32)],
        ),
        compiler_params=pltpu.CompilerParams(
            dimension_semantics=("parallel", "arbitrary")),
    )(feat, ind_p, tgt_p, mask_p, cw3)

    # Trivial glue: cross-batch sum of the per-batch partials and global obj_num.
    obj_num = jnp.sum(msums) + 0.0001
    return jnp.sum(partials[:, :, 0], axis=0) / obj_num                 # (D,)


def reg_loss(output, mask, ind, target, code_weights, weight=1.0):
    """output: (B, D, H, W); mask: (B, M); ind: (B, M) int; target: (B, M, D)."""
    if target.size == 0:
        # Matches PyTorch `output.sum() * 0` (scalar zero — intentionally not (D,)).
        return jnp.sum(output) * 0.0
    cw = jnp.asarray(code_weights, jnp.float32) * float(weight)
    return _reg_loss_pallas(output, mask, ind, target, cw)


def _reg_loss_reference(output, mask, ind, target, code_weights, weight=1.0):
    """Pure-JAX reference mirroring the PyTorch forward."""
    B, D, H, W = output.shape
    feat = jnp.transpose(output, (0, 2, 3, 1)).reshape(B, H * W, D)
    pred = jnp.take_along_axis(feat, ind[:, :, None].astype(jnp.int32), axis=1)  # (B, M, D)
    m = mask.astype(jnp.float32)[:, :, None]
    obj_num = jnp.sum(m) + 0.0001
    loss = jnp.abs(pred * m - target * m)          # (B, M, D)
    loss = jnp.sum(loss, axis=(0, 1))              # (D,)
    return loss * jnp.asarray(code_weights, jnp.float32) * weight / obj_num


def _run_case(key, B, D, H, W, M, code_weights, weight):
    k1, k2, k3, k4 = jax.random.split(key, 4)
    output = jax.random.normal(k1, (B, D, H, W), dtype=jnp.float32)
    target = jax.random.normal(k2, (B, M, D), dtype=jnp.float32)
    ind = jax.random.randint(k3, (B, M), 0, H * W, dtype=jnp.int32)
    mask = (jax.random.uniform(k4, (B, M)) > 0.3).astype(jnp.int32)

    loss = jax.block_until_ready(reg_loss(output, mask, ind, target, code_weights, weight))
    ref = _reg_loss_reference(output, mask, ind, target, code_weights, weight)
    assert loss.shape == (D,)
    assert jnp.allclose(loss, ref, rtol=1e-4, atol=1e-5), (loss, ref)
    return loss


if __name__ == "__main__":
    key = jax.random.PRNGKey(0)
    k_a, k_b = jax.random.split(key)

    weight = 1.0
    code_weights = [1.0, 0.5, 2.0, 1.5]

    # Small shapes per spec: single-tile path (HW <= tile).
    _run_case(k_a, B=2, D=4, H=16, W=16, M=8, code_weights=code_weights, weight=weight)

    # Larger map: exercises the multi-tile accumulation + ragged last tile path.
    _run_case(k_b, B=2, D=4, H=96, W=96, M=40, code_weights=code_weights, weight=weight)

    print("KERNEL_OK")
</pallas_src>

<mosaic_0001>
module attributes {stable_mosaic.version = 11 : i64} {
  func.func @_reg_loss_kernel(%arg0: i32, %arg1: i32, %arg2: memref<1x4x256xf32, #tpu.memory_space<vmem>>, %arg3: memref<1x1x128xi32, #tpu.memory_space<vmem>>, %arg4: memref<1x4x128xf32, #tpu.memory_space<vmem>>, %arg5: memref<1x1x128xi32, #tpu.memory_space<vmem>>, %arg6: memref<1x4x1xf32, #tpu.memory_space<vmem>>, %arg7: memref<1x4x1xf32, #tpu.memory_space<vmem>>, %arg8: memref<1x1x1xf32, #tpu.memory_space<vmem>>, %arg9: memref<4x128xf32, #tpu.memory_space<vmem>>) attributes {dimension_semantics = [#tpu.dimension_semantics<parallel>, #tpu.dimension_semantics<arbitrary>], iteration_bounds = array<i64: 2, 1>, scalar_prefetch = 0 : i64, scratch_operands = 1 : i64, tpu.core_type = #tpu.core_type<tc>, window_params = [{transform_indices = @transform_0, window_bounds = array<i64: 1, 4, 256>}, {transform_indices = @transform_1, window_bounds = array<i64: 1, 1, 128>}, {transform_indices = @transform_2, window_bounds = array<i64: 1, 4, 128>}, {transform_indices = @transform_3, window_bounds = array<i64: 1, 1, 128>}, {pipeline_mode = #tpu.pipeline_mode<synchronous>, transform_indices = @transform_4, window_bounds = array<i64: 1, 4, 1>}, {transform_indices = @transform_5, window_bounds = array<i64: 1, 4, 1>}, {transform_indices = @transform_6, window_bounds = array<i64: 1, 1, 1>}]} {
    %c0_i32 = arith.constant 0 : i32
    %0 = arith.cmpi eq, %arg1, %c0_i32 : i32
    %1 = arith.extui %0 : i1 to i32
    %c0_i32_0 = arith.constant 0 : i32
    %2 = arith.cmpi ne, %1, %c0_i32_0 : i32
    scf.if %2 {
      %cst_12 = arith.constant 0.000000e+00 : f32
      %22 = vector.broadcast %cst_12 : f32 to vector<4x128xf32>
      %c0_13 = arith.constant 0 : index
      %c0_14 = arith.constant 0 : index
      %23 = vector.load %arg9[%c0_13, %c0_14] : memref<4x128xf32, #tpu.memory_space<vmem>>, vector<4x128xf32>
      tpu.vector_store %arg9[%c0_13, %c0_14], %22 {strides = array<i32>} : memref<4x128xf32, #tpu.memory_space<vmem>>, vector<4x128xf32>,
    } else {
    }
    %c256_i32 = arith.constant 256 : i32
    %3 = arith.muli %arg1, %c256_i32 : i32
    %c0 = arith.constant 0 : index
    %c0_1 = arith.constant 0 : index
    %c0_2 = arith.constant 0 : index
    %4 = vector.load %arg2[%c0, %c0_1, %c0_2] : memref<1x4x256xf32, #tpu.memory_space<vmem>>, vector<1x4x256xf32>
    %5 = vector.shape_cast %4 : vector<1x4x256xf32> to vector<4x256xf32>
    %6 = tpu.iota {dimensions = array<i32: 0>} : vector<256x128xi32>
    %7 = vector.broadcast %3 : i32 to vector<256x128xi32>
    %8 = arith.addi %6, %7 : vector<256x128xi32>
    %c0_3 = arith.constant 0 : index
    %c0_4 = arith.constant 0 : index
    %c0_5 = arith.constant 0 : index
    %9 = vector.load %arg3[%c0_3, %c0_4, %c0_5] : memref<1x1x128xi32, #tpu.memory_space<vmem>>, vector<1x1x128xi32>
    %10 = vector.shape_cast %9 : vector<1x1x128xi32> to vector<1x128xi32>
    %11 = vector.broadcast %10 : vector<1x128xi32> to vector<256x128xi32>
    %12 = arith.cmpi eq, %8, %11 : vector<256x128xi32>
    %13 = arith.extui %12 : vector<256x128xi1> to vector<256x128xi32>
    %14 = arith.sitofp %13 : vector<256x128xi32> to vector<256x128xf32>
    %c0_6 = arith.constant 0 : index
    %c0_7 = arith.constant 0 : index
    %15 = vector.load %arg9[%c0_6, %c0_7] : memref<4x128xf32, #tpu.memory_space<vmem>>, vector<4x128xf32>
    %cst = arith.constant dense<0.000000e+00> : vector<4x128xf32>
    %16 = tpu.matmul %5, %14, %cst {dimension_numbers = #tpu.dot_dimension_numbers<[1], [0], [0], [1], [0, 0, 1, 1], [], []>} : vector<4x256xf32>, vector<256x128xf32>, vector<4x128xf32> -> vector<4x128xf32>
    %17 = arith.addf %15, %16 : vector<4x128xf32>
    %c0_8 = arith.constant 0 : index
    %c0_9 = arith.constant 0 : index
    %18 = vector.load %arg9[%c0_8, %c0_9] : memref<4x128xf32, #tpu.memory_space<vmem>>, vector<4x128xf32>
    tpu.vector_store %arg9[%c0_8, %c0_9], %17 {strides = array<i32>} : memref<4x128xf32, #tpu.memory_space<vmem>>, vector<4x128xf32>,
    %c0_i32_10 = arith.constant 0 : i32
    %19 = arith.cmpi eq, %arg1, %c0_i32_10 : i32
    %20 = arith.extui %19 : i1 to i32
    %c0_i32_11 = arith.constant 0 : i32
    %21 = arith.cmpi ne, %20, %c0_i32_11 : i32
    scf.if %21 {
      %c0_12 = arith.constant 0 : index
      %c0_13 = arith.constant 0 : index
      %22 = vector.load %arg9[%c0_12, %c0_13] : memref<4x128xf32, #tpu.memory_space<vmem>>, vector<4x128xf32>
      %c0_14 = arith.constant 0 : index
      %c0_15 = arith.constant 0 : index
      %c0_16 = arith.constant 0 : index
      %23 = vector.load %arg4[%c0_14, %c0_15, %c0_16] : memref<1x4x128xf32, #tpu.memory_space<vmem>>, vector<1x4x128xf32>
      %24 = vector.shape_cast %23 : vector<1x4x128xf32> to vector<4x128xf32>
      %c0_17 = arith.constant 0 : index
      %c0_18 = arith.constant 0 : index
      %c0_19 = arith.constant 0 : index
      %25 = vector.load %arg5[%c0_17, %c0_18, %c0_19] : memref<1x1x128xi32, #tpu.memory_space<vmem>>, vector<1x1x128xi32>
      %26 = vector.shape_cast %25 : vector<1x1x128xi32> to vector<1x128xi32>
      %27 = arith.sitofp %26 : vector<1x128xi32> to vector<1x128xf32>
      %28 = vector.broadcast %27 : vector<1x128xf32> to vector<4x128xf32>
      %29 = arith.mulf %22, %28 : vector<4x128xf32>
      %30 = vector.broadcast %27 : vector<1x128xf32> to vector<4x128xf32>
      %31 = arith.mulf %24, %30 : vector<4x128xf32>
      %32 = arith.subf %29, %31 : vector<4x128xf32>
      %33 = math.absf %32 : vector<4x128xf32>
      %cst_20 = arith.constant dense<0.000000e+00> : vector<4xf32>
      %34 = vector.multi_reduction <add>, %33, %cst_20 [1] : vector<4x128xf32> to vector<4xf32>
      %35 = vector.shape_cast %34 : vector<4xf32> to vector<4x1xf32>
      %c0_21 = arith.constant 0 : index
      %c0_22 = arith.constant 0 : index
      %c0_23 = arith.constant 0 : index
      %36 = vector.load %arg6[%c0_21, %c0_22, %c0_23] : memref<1x4x1xf32, #tpu.memory_space<vmem>>, vector<1x4x1xf32>
      %37 = vector.shape_cast %36 : vector<1x4x1xf32> to vector<4x1xf32>
      %38 = arith.mulf %35, %37 : vector<4x1xf32>
      %c0_24 = arith.constant 0 : index
      %c0_25 = arith.constant 0 : index
      %c0_26 = arith.constant 0 : index
      %39 = vector.load %arg7[%c0_24, %c0_25, %c0_26] : memref<1x4x1xf32, #tpu.memory_space<vmem>>, vector<1x4x1xf32>
      %40 = vector.shape_cast %39 : vector<1x4x1xf32> to vector<4x1xf32>
      %41 = vector.shape_cast %38 : vector<4x1xf32> to vector<1x4x1xf32>
      tpu.vector_store %arg7[%c0_24, %c0_25, %c0_26], %41 {strides = array<i32>} : memref<1x4x1xf32, #tpu.memory_space<vmem>>, vector<1x4x1xf32>,
      %cst_27 = arith.constant dense<0.000000e+00> : vector<1xf32>
      %42 = vector.multi_reduction <add>, %27, %cst_27 [1] : vector<1x128xf32> to vector<1xf32>
      %43 = vector.shape_cast %42 : vector<1xf32> to vector<1x1xf32>
      %c0_28 = arith.constant 0 : index
      %c0_29 = arith.constant 0 : index
      %c0_30 = arith.constant 0 : index
      %44 = vector.load %arg8[%c0_28, %c0_29, %c0_30] : memref<1x1x1xf32, #tpu.memory_space<vmem>>, vector<1x1x1xf32>
      %45 = vector.shape_cast %44 : vector<1x1x1xf32> to vector<1x1xf32>
      %46 = vector.shape_cast %43 : vector<1x1xf32> to vector<1x1x1xf32>
      tpu.vector_store %arg8[%c0_28, %c0_29, %c0_30], %46 {strides = array<i32>} : memref<1x1x1xf32, #tpu.memory_space<vmem>>, vector<1x1x1xf32>,
    } else {
    }
    return
  }
  func.func @transform_0(%arg0: i32, %arg1: i32) -> (i32, i32, i32) {
    %c0_i32 = arith.constant 0 : i32
    %c0_i32_0 = arith.constant 0 : i32
    return %arg0, %c0_i32, %arg1 : i32, i32, i32
  }
  func.func @transform_1(%arg0: i32, %arg1: i32) -> (i32, i32, i32) {
    %c0_i32 = arith.constant 0 : i32
    %c0_i32_0 = arith.constant 0 : i32
    %c0_i32_1 = arith.constant 0 : i32
    return %arg0, %c0_i32, %c0_i32_0 : i32, i32, i32
  }
  func.func @transform_2(%arg0: i32, %arg1: i32) -> (i32, i32, i32) {
    %c0_i32 = arith.constant 0 : i32
    %c0_i32_0 = arith.constant 0 : i32
    %c0_i32_1 = arith.constant 0 : i32
    return %arg0, %c0_i32, %c0_i32_0 : i32, i32, i32
  }
  func.func @transform_3(%arg0: i32, %arg1: i32) -> (i32, i32, i32) {
    %c0_i32 = arith.constant 0 : i32
    %c0_i32_0 = arith.constant 0 : i32
    %c0_i32_1 = arith.constant 0 : i32
    return %arg0, %c0_i32, %c0_i32_0 : i32, i32, i32
  }
  func.func @transform_4(%arg0: i32, %arg1: i32) -> (i32, i32, i32) {
    %c0_i32 = arith.constant 0 : i32
    %c0_i32_0 = arith.constant 0 : i32
    %c0_i32_1 = arith.constant 0 : i32
    %c0_i32_2 = arith.constant 0 : i32
    return %c0_i32, %c0_i32_0, %c0_i32_1 : i32, i32, i32
  }
  func.func @transform_5(%arg0: i32, %arg1: i32) -> (i32, i32, i32) {
    %c0_i32 = arith.constant 0 : i32
    %c0_i32_0 = arith.constant 0 : i32
    %c0_i32_1 = arith.constant 0 : i32
    return %arg0, %c0_i32, %c0_i32_0 : i32, i32, i32
  }
  func.func @transform_6(%arg0: i32, %arg1: i32) -> (i32, i32, i32) {
    %c0_i32 = arith.constant 0 : i32
    %c0_i32_0 = arith.constant 0 : i32
    %c0_i32_1 = arith.constant 0 : i32
    return %arg0, %c0_i32, %c0_i32_0 : i32, i32, i32
  }
}

</mosaic_0001>

<llo_original>
// kernel: _reg_loss_pallas.1
$region0: #{_reg_loss_pallas.1}
  #allocation0 [shape = 'u32[]', space=smem, size = 0x4, offset = 0x4, fixed_abs, tag = 'smem constant byte address 0x4 - core index']
  #allocation1 [shape = 'u32[72,128]{1,0:T(1,128)}', space=vmem, size = 0x9000, scoped, tag = 'internal scratch']
  #allocation2 [shape = 'f32[4,128]{1,0:T(4,128)}', space=vmem, size = 0x800, scoped, tag = 'scratch operand']
  %s0 = inlined_call_operand.vmem [shape: f32[2,4,256], index: 0, kind: input, shape index: {}]
  %s1 = inlined_call_operand.vmem [shape: s32[2,1,128], index: 1, kind: input, shape index: {}]
  %s2 = inlined_call_operand.vmem [shape: f32[2,4,128], index: 2, kind: input, shape index: {}]
  %s3 = inlined_call_operand.vmem [shape: s32[2,1,128], index: 3, kind: input, shape index: {}]
  %s4 = inlined_call_operand.vmem [shape: f32[1,4,1], index: 4, kind: input, shape index: {}]
  %s5 = inlined_call_operand.vmem [shape: f32[2,4,1], index: 5, kind: output, shape index: {0}]
  %s6 = inlined_call_operand.vmem [shape: f32[2,1,1], index: 6, kind: output, shape index: {1}]
  %7 = xla_tuple %s5, %s6
  %s8 = sld [smem:[#allocation0]]
  $region69: #{_reg_loss_pallas.1} parent=0
    _
  %s10 = ssub.s32 1, %s8
  %s11 = scalar_select 0, %s10, %s8
  loop: start=0, step=1, limit=4
  $region2: #{_reg_loss_pallas.1} parent=0 // loop_pre_header
    _
  $region3: #{_reg_loss_pallas.1} parent=0 // loop_header
    %s13 = sphi 0, %s17
    %p14 = scmp.ge.s32.totalorder %s13, 4
    %s20 = sphi 0, %s32
    %s21 = sphi 0, %s28
    %s22 = sphi 0, %s20
    %s23 = sphi 0, %s21
    %s24 = sphi 0, %s22
    %s25 = sphi 0, %s23
    %s37 = sphi 0, %s39
    %s40 = sphi 0, %s37
    %s41 = sphi 0, %s40
    %s57 = sphi 0, %s41
    %s63 = sphi 0, %s65
    %s66 = sphi 0, %s63
    %s67 = sphi 0, %s66
    %s83 = sphi 0, %s67
    %s89 = sphi 0, %s91
    %s92 = sphi 0, %s89
    %s93 = sphi 0, %s92
    %s109 = sphi 0, %s93
    %s115 = sphi 0, %s117
    %s118 = sphi 0, %s115
    %s119 = sphi 0, %s118
    %s135 = sphi 0, %s119
    %s139 = sphi 0, %s139
    %s141 = sphi 0, %s139
    %s142 = sphi 0, %s141
    %s156 = sphi 0, %s142
    %s162 = sphi 0, %s164
    %s165 = sphi 0, %s162
    %s166 = sphi 0, %s165
    %s182 = sphi 0, %s166
    %s188 = sphi 0, %s190
    %s191 = sphi 0, %s188
    %s192 = sphi 0, %s191
    %s208 = sphi 0, %s192
  $region4: #{_reg_loss_pallas.1} parent=0 // loop_header_branch
    %16 = sbr.rel (%p14) target = $region8
  $region5: #{_reg_loss_pallas.1} parent=0 // loop_body
    %s18 = ssub.s32 %s13, 1
    %s19 = ssub.s32 %s13, 2
    %s26 = sadd.s32 1, %s21
    %p27 = scmp.ge.s32.totalorder %s26, 1
    %s28 = scalar_select %p27, 0, %s26
    %s29 = sadd.s32 1, %s20
    %s30 = scalar_select %p27, %s29, %s20
    %p31 = scmp.ge.s32.totalorder %s30, 2
    %s32 = scalar_select %p31, 0, %s30
    %s33 = ssub.s32 %s20, %s32
    %s34 = ssub.s32 %s21, %s28
    %s35 = sor.u32 %s33, %s34
    %p36 = scmp.eq.s32.totalorder %s35, 0
    %s38 = sadd.s32 %s37, 1
    %s39 = scalar_select %p36, %s37, %s38
    %p42 = pneg %p36
    %p43 = scmp.eq.s32.totalorder %s13, 1
    %p44 = por %p42, %p43
    %p45 = scmp.ne.s32.totalorder %s37, %s40
    %p46 = scmp.eq.s32.totalorder %s13, 0
    %p47 = por %p45, %p46
    %p48 = scmp.ne.s32.totalorder %s37, %s40
    %p49 = scmp.eq.s32.totalorder %s18, 1
    %p50 = por %p48, %p49
    %p51 = scmp.ne.s32.totalorder %s40, %s41
    %p52 = scmp.eq.s32.totalorder %s18, 0
    %p53 = por %p51, %p52
    %p54 = scmp.ne.s32.totalorder %s40, %s41
    %p55 = scmp.eq.s32.totalorder %s19, 1
    %p56 = por %p54, %p55
    %p58 = scmp.ne.s32.totalorder %s41, %s57
    %p59 = scmp.eq.s32.totalorder %s19, 0
    %p60 = por %p58, %p59
    %s61 = ssub.s32 %s20, %s32
    %p62 = scmp.eq.s32.totalorder %s61, 0
    %s64 = sadd.s32 %s63, 1
    %s65 = scalar_select %p62, %s63, %s64
    %p68 = pneg %p62
    %p69 = scmp.eq.s32.totalorder %s13, 1
    %p70 = por %p68, %p69
    %p71 = scmp.ne.s32.totalorder %s63, %s66
    %p72 = scmp.eq.s32.totalorder %s13, 0
    %p73 = por %p71, %p72
    %p74 = scmp.ne.s32.totalorder %s63, %s66
    %p75 = scmp.eq.s32.totalorder %s18, 1
    %p76 = por %p74, %p75
    %p77 = scmp.ne.s32.totalorder %s66, %s67
    %p78 = scmp.eq.s32.totalorder %s18, 0
    %p79 = por %p77, %p78
    %p80 = scmp.ne.s32.totalorder %s66, %s67
    %p81 = scmp.eq.s32.totalorder %s19, 1
    %p82 = por %p80, %p81
    %p84 = scmp.ne.s32.totalorder %s67, %s83
    %p85 = scmp.eq.s32.totalorder %s19, 0
    %p86 = por %p84, %p85
    %s87 = ssub.s32 %s20, %s32
    %p88 = scmp.eq.s32.totalorder %s87, 0
    %s90 = sadd.s32 %s89, 1
    %s91 = scalar_select %p88, %s89, %s90
    %p94 = pneg %p88
    %p95 = scmp.eq.s32.totalorder %s13, 1
    %p96 = por %p94, %p95
    %p97 = scmp.ne.s32.totalorder %s89, %s92
    %p98 = scmp.eq.s32.totalorder %s13, 0
    %p99 = por %p97, %p98
    %p100 = scmp.ne.s32.totalorder %s89, %s92
    %p101 = scmp.eq.s32.totalorder %s18, 1
    %p102 = por %p100, %p101
    %p103 = scmp.ne.s32.totalorder %s92, %s93
    %p104 = scmp.eq.s32.totalorder %s18, 0
    %p105 = por %p103, %p104
    %p106 = scmp.ne.s32.totalorder %s92, %s93
    %p107 = scmp.eq.s32.totalorder %s19, 1
    %p108 = por %p106, %p107
    %p110 = scmp.ne.s32.totalorder %s93, %s109
    %p111 = scmp.eq.s32.totalorder %s19, 0
    %p112 = por %p110, %p111
    %s113 = ssub.s32 %s20, %s32
    %p114 = scmp.eq.s32.totalorder %s113, 0
    %s116 = sadd.s32 %s115, 1
    %s117 = scalar_select %p114, %s115, %s116
    %p120 = pneg %p114
    %p121 = scmp.eq.s32.totalorder %s13, 1
    %p122 = por %p120, %p121
    %p123 = scmp.ne.s32.totalorder %s115, %s118
    %p124 = scmp.eq.s32.totalorder %s13, 0
    %p125 = por %p123, %p124
    %p126 = scmp.ne.s32.totalorder %s115, %s118
    %p127 = scmp.eq.s32.totalorder %s18, 1
    %p128 = por %p126, %p127
    %p129 = scmp.ne.s32.totalorder %s118, %s119
    %p130 = scmp.eq.s32.totalorder %s18, 0
    %p131 = por %p129, %p130
    %p132 = scmp.ne.s32.totalorder %s118, %s119
    %p133 = scmp.eq.s32.totalorder %s19, 1
    %p134 = por %p132, %p133
    %p136 = scmp.ne.s32.totalorder %s119, %s135
    %p137 = scmp.eq.s32.totalorder %s19, 0
    %p138 = por %p136, %p137
    %s140 = sadd.s32 %s139, 1
    %p143 = scmp.eq.s32.totalorder %s13, 1
    %p144 = scmp.ne.s32.totalorder %s139, %s141
    %p145 = scmp.eq.s32.totalorder %s13, 0
    %p146 = por %p144, %p145
    %p147 = scmp.ne.s32.totalorder %s139, %s141
    %p148 = scmp.eq.s32.totalorder %s18, 1
    %p149 = por %p147, %p148
    %p150 = scmp.ne.s32.totalorder %s141, %s142
    %p151 = scmp.eq.s32.totalorder %s18, 0
    %p152 = por %p150, %p151
    %p153 = scmp.ne.s32.totalorder %s141, %s142
    %p154 = scmp.eq.s32.totalorder %s19, 1
    %p155 = por %p153, %p154
    %p157 = scmp.ne.s32.totalorder %s142, %s156
    %p158 = scmp.eq.s32.totalorder %s19, 0
    %p159 = por %p157, %p158
    %s160 = ssub.s32 %s20, %s32
    %p161 = scmp.eq.s32.totalorder %s160, 0
    %s163 = sadd.s32 %s162, 1
    %s164 = scalar_select %p161, %s162, %s163
    %p167 = pneg %p161
    %p168 = scmp.eq.s32.totalorder %s13, 1
    %p169 = por %p167, %p168
    %p170 = scmp.ne.s32.totalorder %s162, %s165
    %p171 = scmp.eq.s32.totalorder %s13, 0
    %p172 = por %p170, %p171
    %p173 = scmp.ne.s32.totalorder %s162, %s165
    %p174 = scmp.eq.s32.totalorder %s18, 1
    %p175 = por %p173, %p174
    %p176 = scmp.ne.s32.totalorder %s165, %s166
    %p177 = scmp.eq.s32.totalorder %s18, 0
    %p178 = por %p176, %p177
    %p179 = scmp.ne.s32.totalorder %s165, %s166
    %p180 = scmp.eq.s32.totalorder %s19, 1
    %p181 = por %p179, %p180
    %p183 = scmp.ne.s32.totalorder %s166, %s182
    %p184 = scmp.eq.s32.totalorder %s19, 0
    %p185 = por %p183, %p184
    %s186 = ssub.s32 %s20, %s32
    %p187 = scmp.eq.s32.totalorder %s186, 0
    %s189 = sadd.s32 %s188, 1
    %s190 = scalar_select %p187, %s188, %s189
    %p193 = pneg %p187
    %p194 = scmp.eq.s32.totalorder %s13, 1
    %p195 = por %p193, %p194
    %p196 = scmp.ne.s32.totalorder %s188, %s191
    %p197 = scmp.eq.s32.totalorder %s13, 0
    %p198 = por %p196, %p197
    %p199 = scmp.ne.s32.totalorder %s188, %s191
    %p200 = scmp.eq.s32.totalorder %s18, 1
    %p201 = por %p199, %p200
    %p202 = scmp.ne.s32.totalorder %s191, %s192
    %p203 = scmp.eq.s32.totalorder %s18, 0
    %p204 = por %p202, %p203
    %p205 = scmp.ne.s32.totalorder %s191, %s192
    %p206 = scmp.eq.s32.totalorder %s19, 1
    %p207 = por %p205, %p206
    %p209 = scmp.ne.s32.totalorder %s192, %s208
    %p210 = scmp.eq.s32.totalorder %s19, 0
    %p211 = por %p209, %p210
    %p212 = scmp.le.s32.totalorder 1, %s13
    %p213 = scmp.lt.s32.totalorder %s13, 3
    %p214 = pnand %p212, %p213
    %p215 = pneg %p214
    // Predicated region
    $region9: #{_reg_loss_pallas.1} parent=5 // pred_check
      _
    $region10: #{_reg_loss_pallas.1} parent=5 // pred_check_branch
      %217 = sbr.rel (%p214) target = $region12
    $region11: #{_reg_loss_pallas.1} parent=5 // pred_region
      %s218 = ssub.s32 %s13, 1
      // Predicated region
      $region13: #{_reg_loss_pallas.1} parent=11 // pred_check
        %p219 = pneg %p152
      $region14: #{_reg_loss_pallas.1} parent=11 // pred_check_branch
        %221 = sbr.rel (%p219) target = $region16
      $region15: #{_reg_loss_pallas.1} parent=11 // pred_region
        _
      $region16: #{_reg_loss_pallas.1} parent=11 // pred_fallthru
        _
    $region12: #{_reg_loss_pallas.1} parent=5 // pred_fallthru
      _
    %p222 = scmp.lt.s32.totalorder %s13, 2
    // Predicated region
    $region17: #{_reg_loss_pallas.1} parent=5 // pred_check
      %p223 = pneg %p222
    $region18: #{_reg_loss_pallas.1} parent=5 // pred_check_branch
      %225 = sbr.rel (%p223) target = $region20
    $region19: #{_reg_loss_pallas.1} parent=5 // pred_region
      // Predicated region
      $region21: #{_reg_loss_pallas.1} parent=19 // pred_check
        %p226 = pneg %p47
      $region22: #{_reg_loss_pallas.1} parent=19 // pred_check_branch
        %228 = sbr.rel (%p226) target = $region24
      $region23: #{_reg_loss_pallas.1} parent=19 // pred_region
        %s229 = smul.u32 2, %s21
        %p230 = scmp.lt.s32.totalorder %s20, 1
        %s231 = scalar_select %p230, %s20, 1
        %p232 = scmp.lt.s32.totalorder %s229, 1
        %s233 = scalar_select %p232, %s229, 1
        %s234 = smul.addr %s231, 2
        %s235 = sadd.s32 %s233, %s234
        %s236 = smul.addr %s235, 4
        %s237 = scalar_lea.vmem %s0, %s236
        %s238 = smul.u32 2, %s21
      $region24: #{_reg_loss_pallas.1} parent=19 // pred_fallthru
        _
      // Predicated region
      $region25: #{_reg_loss_pallas.1} parent=19 // pred_check
        %p239 = pneg %p73
      $region26: #{_reg_loss_pallas.1} parent=19 // pred_check_branch
        %241 = sbr.rel (%p239) target = $region28
      $region27: #{_reg_loss_pallas.1} parent=19 // pred_region
        %p242 = scmp.lt.s32.totalorder %s20, 1
        %s243 = scalar_select %p242, %s20, 1
        %s244 = scalar_lea.vmem %s1, %s243
      $region28: #{_reg_loss_pallas.1} parent=19 // pred_fallthru
        _
      // Predicated region
      $region29: #{_reg_loss_pallas.1} parent=19 // pred_check
        %p245 = pneg %p99
      $region30: #{_reg_loss_pallas.1} parent=19 // pred_check_branch
        %247 = sbr.rel (%p245) target = $region32
      $region31: #{_reg_loss_pallas.1} parent=19 // pred_region
        %p248 = scmp.lt.s32.totalorder %s20, 1
        %s249 = scalar_select %p248, %s20, 1
        %s250 = smul.addr %s249, 4
        %s251 = scalar_lea.vmem %s2, %s250
      $region32: #{_reg_loss_pallas.1} parent=19 // pred_fallthru
        _
      // Predicated region
      $region33: #{_reg_loss_pallas.1} parent=19 // pred_check
        %p252 = pneg %p125
      $region34: #{_reg_loss_pallas.1} parent=19 // pred_check_branch
        %254 = sbr.rel (%p252) target = $region36
      $region35: #{_reg_loss_pallas.1} parent=19 // pred_region
        %p255 = scmp.lt.s32.totalorder %s20, 1
        %s256 = scalar_select %p255, %s20, 1
        %s257 = scalar_lea.vmem %s3, %s256
      $region36: #{_reg_loss_pallas.1} parent=19 // pred_fallthru
        _
    $region20: #{_reg_loss_pallas.1} parent=5 // pred_fallthru
      _
    %p258 = scmp.le.s32.totalorder 1, %s13
    %p259 = scmp.lt.s32.totalorder %s13, 3
    %p260 = pnand %p258, %p259
    %p261 = pneg %p260
    // Predicated region
    $region37: #{_reg_loss_pallas.1} parent=5 // pred_check
      _
    $region38: #{_reg_loss_pallas.1} parent=5 // pred_check_branch
      %263 = sbr.rel (%p260) target = $region40
    $region39: #{_reg_loss_pallas.1} parent=5 // pred_region
      %s264 = ssub.s32 %s13, 1
      %s265 = smul.u32 2, %s23
      %p266 = scmp.lt.s32.totalorder %s22, 1
      %s267 = scalar_select %p266, %s22, 1
      %p268 = scmp.lt.s32.totalorder %s265, 1
      %s269 = scalar_select %p268, %s265, 1
      %s270 = smul.addr %s267, 2
      %s271 = sadd.s32 %s269, %s270
      %s272 = smul.addr %s271, 4
      %s273 = scalar_lea.vmem %s0, %s272
      %p274 = pneg %p53
      %p275 = pneg %p50
      %p276 = scmp.lt.s32.totalorder %s22, 1
      %s277 = scalar_select %p276, %s22, 1
      %s278 = scalar_lea.vmem %s1, %s277
      %p279 = pneg %p79
      %p280 = pneg %p76
      %p281 = scmp.lt.s32.totalorder %s22, 1
      %s282 = scalar_select %p281, %s22, 1
      %s283 = smul.addr %s282, 4
      %s284 = scalar_lea.vmem %s2, %s283
      %p285 = pneg %p105
      %p286 = pneg %p102
      %p287 = scmp.lt.s32.totalorder %s22, 1
      %s288 = scalar_select %p287, %s22, 1
      %s289 = scalar_lea.vmem %s3, %s288
      %p290 = pneg %p131
      %p291 = pneg %p128
      %p292 = pneg %p152
      %p293 = pneg %p149
      %p294 = pneg %p178
      %p295 = pneg %p175
      %p296 = scmp.lt.s32.totalorder %s22, 1
      %s297 = scalar_select %p296, %s22, 1
      %s298 = smul.addr %s297, 4
      %s299 = scalar_lea.vmem %s5, %s298
      %p300 = pneg %p204
      %p301 = pneg %p201
      %p302 = scmp.lt.s32.totalorder %s22, 1
      %s303 = scalar_select %p302, %s22, 1
      %s304 = scalar_lea.vmem %s6, %s303
      %s305 = smul.u32 2, %s23
      %p306 = scmp.lt.s32.totalorder %s22, 1
      %s307 = scalar_select %p306, %s22, 1
      %p308 = scmp.lt.s32.totalorder %s305, 1
      %s309 = scalar_select %p308, %s305, 1
      %s310 = smul.addr %s307, 2
      %s311 = sadd.s32 %s309, %s310
      %s312 = smul.addr %s311, 4
      %s313 = scalar_lea.vmem %s0, %s312
      %s314 = smul.u32 2, %s23
      %p315 = scmp.lt.s32.totalorder %s22, 1
      %s316 = scalar_select %p315, %s22, 1
      %s317 = scalar_lea.vmem %s1, %s316
      %p318 = scmp.lt.s32.totalorder %s22, 1
      %s319 = scalar_select %p318, %s22, 1
      %s320 = smul.addr %s319, 4
      %s321 = scalar_lea.vmem %s2, %s320
      %p322 = scmp.lt.s32.totalorder %s22, 1
      %s323 = scalar_select %p322, %s22, 1
      %s324 = scalar_lea.vmem %s3, %s323
      %p325 = scmp.lt.s32.totalorder %s22, 1
      %s326 = scalar_select %p325, %s22, 1
      %s327 = smul.addr %s326, 4
      %s328 = scalar_lea.vmem %s5, %s327
      %p329 = scmp.lt.s32.totalorder %s22, 1
      %s330 = scalar_select %p329, %s22, 1
      %s331 = scalar_lea.vmem %s6, %s330
      %p332 = scmp.eq.s32.totalorder %s23, 0
      // Predicated region
      $region41: #{_reg_loss_pallas.1} parent=39 // pred_check
        %p333 = pneg %p332
      $region42: #{_reg_loss_pallas.1} parent=39 // pred_check_branch
        %335 = sbr.rel (%p333) target = $region44
      $region43: #{_reg_loss_pallas.1} parent=39 // pred_region
        %336 = vst [vmem:[#allocation2] sm:$0xf] 0.0
      $region44: #{_reg_loss_pallas.1} parent=39 // pred_fallthru
        _
      %s337 = smul.u32 %s23, 256
      %v338 = vld [vmem:[%s313] sm:$0xff]
      %v339 = vlaneseq
      %v340 = vshrl.u32 %v339, 7
      %v341 = vadd.s32 %v340, 8
      %v342 = vadd.s32 %v340, 16
      %v343 = vadd.s32 %v340, 24
      %v344 = vadd.s32 %v340, 32
      %v345 = vadd.s32 %v340, 40
      %v346 = vadd.s32 %v340, 48
      %v347 = vadd.s32 %v340, 56
      %v348 = vadd.s32 %v340, 64
      %v349 = vadd.s32 %v340, 72
      %v350 = vadd.s32 %v340, 80
      %v351 = vadd.s32 %v340, 88
      %v352 = vadd.s32 %v340, 96
      %v353 = vadd.s32 %v340, 104
      %v354 = vadd.s32 %v340, 112
      %v355 = vadd.s32 %v340, 120
      %v356 = vadd.s32 %v340, 128
      %v357 = vadd.s32 %v340, 136
      %v358 = vadd.s32 %v340, 144
      %v359 = vadd.s32 %v340, 152
      %v360 = vadd.s32 %v340, 160
      %v361 = vadd.s32 %v340, 168
      %v362 = vadd.s32 %v340, 176
      %v363 = vadd.s32 %v340, 184
      %v364 = vadd.s32 %v340, 192
      %v365 = vadd.s32 %v340, 200
      %v366 = vadd.s32 %v340, 208
      %v367 = vadd.s32 %v340, 216
      %v368 = vadd.s32 %v340, 224
      %v369 = vadd.s32 %v340, 232
      %v370 = vadd.s32 %v340, 240
      %v371 = vadd.s32 %v340, 248
      %v372 = vstv %s337
      %v373 = vadd.s32 %v340, %v372
      %v374 = vadd.s32 %v341, %v372
      %v375 = vadd.s32 %v342, %v372
      %v376 = vadd.s32 %v343, %v372
      %v377 = vadd.s32 %v344, %v372
      %v378 = vadd.s32 %v345, %v372
      %v379 = vadd.s32 %v346, %v372
      %v380 = vadd.s32 %v347, %v372
      %v381 = vadd.s32 %v348, %v372
      %v382 = vadd.s32 %v349, %v372
      %v383 = vadd.s32 %v350, %v372
      %v384 = vadd.s32 %v351, %v372
      %v385 = vadd.s32 %v352, %v372
      %v386 = vadd.s32 %v353, %v372
      %v387 = vadd.s32 %v354, %v372
      %v388 = vadd.s32 %v355, %v372
      %v389 = vadd.s32 %v356, %v372
      %v390 = vadd.s32 %v357, %v372
      %v391 = vadd.s32 %v358, %v372
      %v392 = vadd.s32 %v359, %v372
      %v393 = vadd.s32 %v360, %v372
      %v394 = vadd.s32 %v361, %v372
      %v395 = vadd.s32 %v362, %v372
      %v396 = vadd.s32 %v363, %v372
      %v397 = vadd.s32 %v364, %v372
      %v398 = vadd.s32 %v365, %v372
      %v399 = vadd.s32 %v366, %v372
      %v400 = vadd.s32 %v367, %v372
      %v401 = vadd.s32 %v368, %v372
      %v402 = vadd.s32 %v369, %v372
      %v403 = vadd.s32 %v370, %v372
      %v404 = vadd.s32 %v371, %v372
      %v405 = vld [vmem:[%s317] sm:$0x1]
      %v406 = vperm.slane %v405, 0
      %vm407 = vcmp.eq.s32.totalorder %v373, %v406
      %vm408 = vcmp.eq.s32.totalorder %v374, %v406
      %vm409 = vcmp.eq.s32.totalorder %v375, %v406
      %vm410 = vcmp.eq.s32.totalorder %v376, %v406
      %vm411 = vcmp.eq.s32.totalorder %v377, %v406
      %vm412 = vcmp.eq.s32.totalorder %v378, %v406
      %vm413 = vcmp.eq.s32.totalorder %v379, %v406
      %vm414 = vcmp.eq.s32.totalorder %v380, %v406
      %vm415 = vcmp.eq.s32.totalorder %v381, %v406
      %vm416 = vcmp.eq.s32.totalorder %v382, %v406
      %vm417 = vcmp.eq.s32.totalorder %v383, %v406
      %vm418 = vcmp.eq.s32.totalorder %v384, %v406
      %vm419 = vcmp.eq.s32.totalorder %v385, %v406
      %vm420 = vcmp.eq.s32.totalorder %v386, %v406
      %vm421 = vcmp.eq.s32.totalorder %v387, %v406
      %vm422 = vcmp.eq.s32.totalorder %v388, %v406
      %vm423 = vcmp.eq.s32.totalorder %v389, %v406
      %vm424 = vcmp.eq.s32.totalorder %v390, %v406
      %vm425 = vcmp.eq.s32.totalorder %v391, %v406
      %vm426 = vcmp.eq.s32.totalorder %v392, %v406
      %vm427 = vcmp.eq.s32.totalorder %v393, %v406
      %vm428 = vcmp.eq.s32.totalorder %v394, %v406
      %vm429 = vcmp.eq.s32.totalorder %v395, %v406
      %vm430 = vcmp.eq.s32.totalorder %v396, %v406
      %vm431 = vcmp.eq.s32.totalorder %v397, %v406
      %vm432 = vcmp.eq.s32.totalorder %v398, %v406
      %vm433 = vcmp.eq.s32.totalorder %v399, %v406
      %vm434 = vcmp.eq.s32.totalorder %v400, %v406
      %vm435 = vcmp.eq.s32.totalorder %v401, %v406
      %vm436 = vcmp.eq.s32.totalorder %v402, %v406
      %vm437 = vcmp.eq.s32.totalorder %v403, %v406
      %vm438 = vcmp.eq.s32.totalorder %v404, %v406
      %v439 = vsel %vm407, 1, 0
      %v440 = vsel %vm408, 1, 0
      %v441 = vsel %vm409, 1, 0
      %v442 = vsel %vm410, 1, 0
      %v443 = vsel %vm411, 1, 0
      %v444 = vsel %vm412, 1, 0
      %v445 = vsel %vm413, 1, 0
      %v446 = vsel %vm414, 1, 0
      %v447 = vsel %vm415, 1, 0
      %v448 = vsel %vm416, 1, 0
      %v449 = vsel %vm417, 1, 0
      %v450 = vsel %vm418, 1, 0
      %v451 = vsel %vm419, 1, 0
      %v452 = vsel %vm420, 1, 0
      %v453 = vsel %vm421, 1, 0
      %v454 = vsel %vm422, 1, 0
      %v455 = vsel %vm423, 1, 0
      %v456 = vsel %vm424, 1, 0
      %v457 = vsel %vm425, 1, 0
      %v458 = vsel %vm426, 1, 0
      %v459 = vsel %vm427, 1, 0
      %v460 = vsel %vm428, 1, 0
      %v461 = vsel %vm429, 1, 0
      %v462 = vsel %vm430, 1, 0
      %v463 = vsel %vm431, 1, 0
      %v464 = vsel %vm432, 1, 0
      %v465 = vsel %vm433, 1, 0
      %v466 = vsel %vm434, 1, 0
      %v467 = vsel %vm435, 1, 0
      %v468 = vsel %vm436, 1, 0
      %v469 = vsel %vm437, 1, 0
      %v470 = vsel %vm438, 1, 0
      %v471 = vcvt.s32.f32 %v439
      %v472 = vcvt.s32.f32 %v440
      %v473 = vcvt.s32.f32 %v441
      %v474 = vcvt.s32.f32 %v442
      %v475 = vcvt.s32.f32 %v443
      %v476 = vcvt.s32.f32 %v444
      %v477 = vcvt.s32.f32 %v445
      %v478 = vcvt.s32.f32 %v446
      %v479 = vcvt.s32.f32 %v447
      %v480 = vcvt.s32.f32 %v448
      %v481 = vcvt.s32.f32 %v449
      %v482 = vcvt.s32.f32 %v450
      %v483 = vcvt.s32.f32 %v451
      %v484 = vcvt.s32.f32 %v452
      %v485 = vcvt.s32.f32 %v453
      %v486 = vcvt.s32.f32 %v454
      %v487 = vcvt.s32.f32 %v455
      %v488 = vcvt.s32.f32 %v456
      %v489 = vcvt.s32.f32 %v457
      %v490 = vcvt.s32.f32 %v458
      %v491 = vcvt.s32.f32 %v459
      %v492 = vcvt.s32.f32 %v460
      %v493 = vcvt.s32.f32 %v461
      %v494 = vcvt.s32.f32 %v462
      %v495 = vcvt.s32.f32 %v463
      %v496 = vcvt.s32.f32 %v464
      %v497 = vcvt.s32.f32 %v465
      %v498 = vcvt.s32.f32 %v466
      %v499 = vcvt.s32.f32 %v467
      %v500 = vcvt.s32.f32 %v468
      %v501 = vcvt.s32.f32 %v469
      %v502 = vcvt.s32.f32 %v470
      %v503 = vld [vmem:[#allocation2] sm:$0xf]
      %505 = vst [vmem:[#allocation1] ss:$2 sm:$0xff] %v338
      %v506 = vld.sshfl [vmem:[#allocation1] sm:$0xff pattern:$0x75316420]
      %v507 = vld.sshfl [vmem:[#allocation1 + $0x8] sm:$0xff pattern:$0x75316420]
      %510 = vmatpush.msra.mxu0 %v486
      %511 = vmatpush.msra.mxu0 %v485
      %512 = vmatpush.msra.mxu0 %v484
      %513 = vmatpush.msra.mxu0 %v483
      %514 = vmatpush.msra.mxu0 %v482
      %515 = vmatpush.msra.mxu0 %v481
      %516 = vmatpush.msra.mxu0 %v480
      %517 = vmatpush.msra.mxu0 %v479
      %518 = vmatpush.msra.mxu0 %v478
      %519 = vmatpush.msra.mxu0 %v477
      %520 = vmatpush.msra.mxu0 %v476
      %521 = vmatpush.msra.mxu0 %v475
      %522 = vmatpush.msra.mxu0 %v474
      %523 = vmatpush.msra.mxu0 %v473
      %524 = vmatpush.msra.mxu0 %v472
      %525 = vmatpush.msra.mxu0 %v471
      %526 = vmatmul.f32.gmra.mxu0 %v506
      %v527 = vpop.f32.mrf.mxu0
      %v528 = vadd.f32 0.0, %v527
      %529 = vdwg.mxu0
      %530 = vmatpush.msra.mxu0 %v502
      %531 = vmatpush.msra.mxu0 %v501
      %532 = vmatpush.msra.mxu0 %v500
      %533 = vmatpush.msra.mxu0 %v499
      %534 = vmatpush.msra.mxu0 %v498
      %535 = vmatpush.msra.mxu0 %v497
      %536 = vmatpush.msra.mxu0 %v496
      %537 = vmatpush.msra.mxu0 %v495
      %538 = vmatpush.msra.mxu0 %v494
      %539 = vmatpush.msra.mxu0 %v493
      %540 = vmatpush.msra.mxu0 %v492
      %541 = vmatpush.msra.mxu0 %v491
      %542 = vmatpush.msra.mxu0 %v490
      %543 = vmatpush.msra.mxu0 %v489
      %544 = vmatpush.msra.mxu0 %v488
      %545 = vmatpush.msra.mxu0 %v487
      %546 = vmatmul.f32.gmra.mxu0 %v507
      %v547 = vpop.f32.mrf.mxu0
      %v548 = vadd.f32 %v528, %v547
      %549 = vdwg.mxu0
      %v550 = vadd.f32 %v503, %v548
      %551 = vst [vmem:[#allocation2] sm:$0xf] %v550
      // Predicated region
      $region45: #{_reg_loss_pallas.1} parent=39 // pred_check
        %p552 = pneg %p332
      $region46: #{_reg_loss_pallas.1} parent=39 // pred_check_branch
        %554 = sbr.rel (%p552) target = $region48
      $region47: #{_reg_loss_pallas.1} parent=39 // pred_region
        %v555 = vld [vmem:[#allocation2] sm:$0xf]
        %v556 = vld [vmem:[%s321] sm:$0xf]
        %v557 = vld [vmem:[%s324] sm:$0x1]
        %v558 = vcvt.s32.f32 %v557
        %v560 = vperm.slane %v558, 0
        %v562 = vmul.f32 %v555, %v560
        %v563 = vmul.f32 %v556, %v560
        %v564 = vsub.f32 %v562, %v563
        %v565 = vand.u32 2147483647, %v564
        %vm566 = vcmask 1043456
        %v567 = vsel %vm566, %v565, 0.0
        %568 = vadd.xlane.f32.xlu0 %v567
        %v569 = vpop.xlane.xlu0 %568
        %v570 = vld [vmem:[%s4] sm:$0xf]
        %v571 = vmul.f32 %v569, %v570
        %vm572 = vcmask 3072
        %573 = vst.msk [vmem:[%s328] sm:$0xf] %vm572, %v571
        %vm574 = vcmask 1040384
        %v575 = vsel %vm574, %v558, 0.0
        %576 = vadd.xlane.f32.xlu0 %v575
        %v577 = vpop.xlane.xlu0 %576
        %vm578 = vcmask 0
        %579 = vst.msk [vmem:[%s331] sm:$0x1] %vm578, %v577
      $region48: #{_reg_loss_pallas.1} parent=39 // pred_fallthru
        _
      %p580 = scmp.lt.s32.totalorder %s22, 1
      %s581 = scalar_select %p580, %s22, 1
      %s582 = smul.addr %s581, 4
      %s583 = scalar_lea.vmem %s5, %s582
      %p584 = scmp.lt.s32.totalorder %s22, 1
      %s585 = scalar_select %p584, %s22, 1
      %s586 = scalar_lea.vmem %s6, %s585
      // Predicated region
      $region49: #{_reg_loss_pallas.1} parent=39 // pred_check
        %p587 = pneg %p175
      $region50: #{_reg_loss_pallas.1} parent=39 // pred_check_branch
        %589 = sbr.rel (%p587) target = $region52
      $region51: #{_reg_loss_pallas.1} parent=39 // pred_region
        _
      $region52: #{_reg_loss_pallas.1} parent=39 // pred_fallthru
        _
      // Predicated region
      $region53: #{_reg_loss_pallas.1} parent=39 // pred_check
        %p590 = pneg %p201
      $region54: #{_reg_loss_pallas.1} parent=39 // pred_check_branch
        %592 = sbr.rel (%p590) target = $region56
      $region55: #{_reg_loss_pallas.1} parent=39 // pred_region
        _
      $region56: #{_reg_loss_pallas.1} parent=39 // pred_fallthru
        _
    $region40: #{_reg_loss_pallas.1} parent=5 // pred_fallthru
      _
    %p593 = scmp.le.s32.totalorder 2, %s13
    // Predicated region
    $region57: #{_reg_loss_pallas.1} parent=5 // pred_check
      %p594 = pneg %p593
    $region58: #{_reg_loss_pallas.1} parent=5 // pred_check_branch
      %596 = sbr.rel (%p594) target = $region60
    $region59: #{_reg_loss_pallas.1} parent=5 // pred_region
      %s597 = ssub.s32 %s13, 2
      // Predicated region
      $region61: #{_reg_loss_pallas.1} parent=59 // pred_check
        %p598 = pneg %p181
      $region62: #{_reg_loss_pallas.1} parent=59 // pred_check_branch
        %600 = sbr.rel (%p598) target = $region64
      $region63: #{_reg_loss_pallas.1} parent=59 // pred_region
        %p601 = scmp.lt.s32.totalorder %s24, 1
        %s602 = scalar_select %p601, %s24, 1
        %s603 = smul.addr %s602, 4
        %s604 = scalar_lea.vmem %s5, %s603
      $region64: #{_reg_loss_pallas.1} parent=59 // pred_fallthru
        _
      // Predicated region
      $region65: #{_reg_loss_pallas.1} parent=59 // pred_check
        %p605 = pneg %p207
      $region66: #{_reg_loss_pallas.1} parent=59 // pred_check_branch
        %607 = sbr.rel (%p605) target = $region68
      $region67: #{_reg_loss_pallas.1} parent=59 // pred_region
        %p608 = scmp.lt.s32.totalorder %s24, 1
        %s609 = scalar_select %p608, %s24, 1
        %s610 = scalar_lea.vmem %s6, %s609
      $region68: #{_reg_loss_pallas.1} parent=59 // pred_fallthru
        _
    $region60: #{_reg_loss_pallas.1} parent=5 // pred_fallthru
      _
  $region6: #{_reg_loss_pallas.1} parent=0 // loop_footer
    %s17 = sadd.s32 1, %s13
  $region7: #{_reg_loss_pallas.1} parent=0 // loop_footer_branch
    %12 = sbr.rel target = $region3
  $region8: #{_reg_loss_pallas.1} parent=0 // loop_exit
    _

</llo_original>
